<compile_context>
chip_gen: v7x
topology: tpu7x:2x2x1
jax: 0.10.0
libtpu: 0.0.40
codegen_flags: <defaults>
</compile_context>

<pallas_src>
import math

import jax
import jax.numpy as jnp
from jax.experimental import pallas as pl
from jax.experimental.pallas import tpu as pltpu


# --------------------------------------------------------------------------------------
# pos_encoding buffer (matches the PyTorch __init__ exactly)
# --------------------------------------------------------------------------------------
def _pos_encoding_buffer(dim_model: int, max_len: int) -> jnp.ndarray:
    assert dim_model % 2 == 0, "dim_model must be even (sin/cos interleave)"
    positions = jnp.arange(0, max_len, dtype=jnp.float32).reshape(-1, 1)       # (max_len, 1)
    division_term = jnp.exp(
        jnp.arange(0, dim_model, 2, dtype=jnp.float32) * (-math.log(10000.0) / dim_model)
    )
    pe = jnp.zeros((max_len, dim_model), dtype=jnp.float32)
    pe = pe.at[:, 0::2].set(jnp.sin(positions * division_term))
    pe = pe.at[:, 1::2].set(jnp.cos(positions * division_term))
    return pe[:, None, :]                                                       # (max_len, 1, D)


# --------------------------------------------------------------------------------------
# Kernels
# --------------------------------------------------------------------------------------
def _pe_add_kernel_batched(x_ref, pe_ref, o_ref):
    """x/o: (t_s, t_b, D) model dtype; pe: (t_s, 1, D) f32. Broadcast-add over batch."""
    o_ref[...] = x_ref[...] + pe_ref[...].astype(o_ref.dtype)


def _make_pe_add_kernel_flat(batch: int, dim: int):
    """Small-batch path. x/o: (t_s, B*D) model dtype; pe: (t_s, D) f32; B < sublane pack."""
    def kernel(x_ref, pe_ref, o_ref):
        pe = pe_ref[...].astype(o_ref.dtype)          # tiny cast, hoisted out of the loop
        for j in range(batch):                        # static unroll; batch < 16 here
            sl = slice(j * dim, (j + 1) * dim)        # static lane slice
            o_ref[:, sl] = x_ref[:, sl] + pe
    return kernel


# --------------------------------------------------------------------------------------
# Sizing helpers
# --------------------------------------------------------------------------------------
def _round_up(x: int, n: int) -> int:
    return ((x + n - 1) // n) * n


def _round_down(x: int, n: int) -> int:
    return (x // n) * n


def _sublane_pack(dtype) -> int:
    return {4: 8, 2: 16, 1: 32}.get(jnp.dtype(dtype).itemsize, 8)


def _target_block_bytes() -> int:
    """Per-generation block target for this pure HBM-stream kernel."""
    try:
        kind = jax.devices()[0].device_kind.lower()
    except Exception:
        return 4 << 20
    if "v5 lite" in kind or "v5e" in kind or "v5lite" in kind:
        return 2 << 20       # v5e: slower HBM, tightest default scoped VMEM
    if "7" in kind:
        return 6 << 20       # v7x: 3.2 TB/s/TC wants bigger blocks to hide per-step overhead
    return 4 << 20           # v6e / default


# --------------------------------------------------------------------------------------
# Forward
# --------------------------------------------------------------------------------------
def positional_encoding_forward(token_embedding: jnp.ndarray,
                                pos_encoding: jnp.ndarray) -> jnp.ndarray:
    """token_embedding: (S, B, D); pos_encoding: (max_len, 1, D) float32 buffer."""
    S, B, D = token_embedding.shape
    max_len = pos_encoding.shape[0]
    dtype = token_embedding.dtype
    itemsize = jnp.dtype(dtype).itemsize
    sub = _sublane_pack(dtype)
    blk_target = _target_block_bytes()

    if B < sub:
        # ---- small-batch "lane" path: view x as (S, B*D); seq -> sublanes (dense) ------
        x2 = token_embedding.reshape(S, B * D)            # free contiguous reshape
        pe2 = pos_encoding.reshape(max_len, D)            # free contiguous reshape
        row_bytes = B * D * itemsize                      # dense, no sublane padding
        t_s = max(sub, _round_down(blk_target // max(row_bytes, 1), sub))
        if t_s >= S and S > sub:
            # prefer >=2 grid steps so a v7x megacore can put one half on each TensorCore
            t_s = max(sub, _round_up(-(-S // 2), sub))
        # keep t_s a multiple of the pack; an oversized last block is masked by Pallas
        t_s = min(t_s, _round_up(S, sub))
        grid = (pl.cdiv(S, t_s),)
        x_blk = t_s * B * D * itemsize
        pe_blk = t_s * D * 4
        kernel = _make_pe_add_kernel_flat(B, D)
        in_specs = [pl.BlockSpec((t_s, B * D), lambda i: (i, 0)),
                    pl.BlockSpec((t_s, D), lambda i: (i, 0))]
        out_specs = pl.BlockSpec((t_s, B * D), lambda i: (i, 0))
        out_shape = jax.ShapeDtypeStruct((S, B * D), dtype)
        dim_sem = ("parallel",)
        args = (x2, pe2)
    else:
        # ---- batched path: B >= sublane pack, (B, D) minor dims already dense ----------
        d_bytes = D * itemsize
        t_b = B
        if _round_up(B, sub) * d_bytes > blk_target:
            # a single (B, D) slab would blow the budget -> tile the batch axis too
            t_b = min(B, max(sub, _round_down(blk_target // d_bytes, sub)))
        row_bytes = _round_up(t_b, sub) * d_bytes          # physical (sublane-padded) bytes
        t_s = max(1, blk_target // row_bytes)
        if t_s >= S and S > 1 and t_b == B:
            t_s = -(-S // 2)                               # >=2 grid steps when possible
        t_s = min(t_s, S)
        grid = (pl.cdiv(S, t_s), pl.cdiv(B, t_b))
        x_blk = t_s * _round_up(t_b, sub) * D * itemsize
        pe_blk = t_s * 8 * D * 4                           # size-1 batch dim pads to 8 sublanes
        kernel = _pe_add_kernel_batched
        in_specs = [pl.BlockSpec((t_s, t_b, D), lambda i, j: (i, j, 0)),
                    pl.BlockSpec((t_s, 1, D), lambda i, j: (i, 0, 0))]
        out_specs = pl.BlockSpec((t_s, t_b, D), lambda i, j: (i, j, 0))
        out_shape = jax.ShapeDtypeStruct((S, B, D), dtype)
        dim_sem = ("parallel", "parallel")
        args = (token_embedding, pos_encoding)

    # Double-buffered x/out/pe blocks + in-kernel temporaries + margin; clamp to a range
    # that is safe on every generation (v5e 128 MiB, v6e 128 MiB, v7x 64 MiB physical).
    vmem_needed = 2 * (2 * x_blk + pe_blk) + x_blk + (4 << 20)
    vmem_limit = int(min(max(vmem_needed, 32 << 20), 56 << 20))

    cost = pl.CostEstimate(
        flops=S * B * D,
        transcendentals=0,
        bytes_accessed=2 * S * B * D * itemsize + S * D * 4,
    )

    out = pl.pallas_call(
        kernel,
        out_shape=out_shape,
        grid=grid,
        in_specs=in_specs,
        out_specs=out_specs,
        compiler_params=pltpu.CompilerParams(
            dimension_semantics=dim_sem,
            vmem_limit_bytes=vmem_limit,
        ),
        cost_estimate=cost,
    )(*args)
    return out.reshape(S, B, D)


# --------------------------------------------------------------------------------------
# Demo / checks
# --------------------------------------------------------------------------------------
if __name__ == "__main__":
    # 1) Module's natural toy shapes: small batch -> lane path (B*D on lanes), f32, grid=1.
    dim_model, max_len, dropout_p = 32, 64, 0.1      # dropout: eval-mode identity
    seq_len, batch = 8, 2
    key = jax.random.PRNGKey(0)
    x = jax.random.normal(key, (seq_len, batch, dim_model), dtype=jnp.float32)
    pe = _pos_encoding_buffer(dim_model, max_len)

    out = jax.block_until_ready(positional_encoding_forward(x, pe))
    ref = x + pe[:seq_len]
    assert out.shape == (seq_len, batch, dim_model)
    assert jnp.allclose(out, ref, atol=1e-6), "mismatch vs reference (f32 demo)"

    # 2) Multi-block bf16 run on the batched (B >= sublane pack) path.
    S2, B2, D2, L2 = 256, 16, 256, 512
    x2 = jax.random.normal(jax.random.PRNGKey(0), (S2, B2, D2), jnp.float32).astype(jnp.bfloat16)
    pe2 = _pos_encoding_buffer(D2, L2)
    out2 = jax.block_until_ready(positional_encoding_forward(x2, pe2))
    ref2 = x2 + pe2[:S2].astype(jnp.bfloat16)
    assert jnp.allclose(out2.astype(jnp.float32), ref2.astype(jnp.float32), atol=1e-2), \
        "mismatch vs reference (bf16 batched path)"

    # 3) Multi-block bf16 run on the small-batch lane path with 128-aligned D.
    S3, B3, D3, L3 = 512, 4, 128, 1024
    x3 = jax.random.normal(jax.random.PRNGKey(0), (S3, B3, D3), jnp.float32).astype(jnp.bfloat16)
    pe3 = _pos_encoding_buffer(D3, L3)
    out3 = jax.block_until_ready(positional_encoding_forward(x3, pe3))
    ref3 = x3 + pe3[:S3].astype(jnp.bfloat16)
    assert jnp.allclose(out3.astype(jnp.float32), ref3.astype(jnp.float32), atol=1e-2), \
        "mismatch vs reference (bf16 lane path)"

    print("KERNEL_OK")
</pallas_src>

<mosaic_0001>
module attributes {stable_mosaic.version = 11 : i64} {
  func.func @kernel(%arg0: i32, %arg1: memref<8x64xf32, #tpu.memory_space<vmem>>, %arg2: memref<8x32xf32, #tpu.memory_space<vmem>>, %arg3: memref<8x64xf32, #tpu.memory_space<vmem>>) attributes {dimension_semantics = [#tpu.dimension_semantics<parallel>], iteration_bounds = array<i64: 1>, scalar_prefetch = 0 : i64, scratch_operands = 0 : i64, tpu.core_type = #tpu.core_type<tc>, window_params = [{transform_indices = @transform_0, window_bounds = array<i64: 8, 64>}, {transform_indices = @transform_1, window_bounds = array<i64: 8, 32>}, {transform_indices = @transform_2, window_bounds = array<i64: 8, 64>}]} {
    %c0 = arith.constant 0 : index
    %c0_0 = arith.constant 0 : index
    %0 = vector.load %arg2[%c0, %c0_0] : memref<8x32xf32, #tpu.memory_space<vmem>>, vector<8x32xf32>
    %c0_1 = arith.constant 0 : index
    %c0_2 = arith.constant 0 : index
    %1 = vector.load %arg1[%c0_1, %c0_2] : memref<8x64xf32, #tpu.memory_space<vmem>>, vector<8x32xf32>
    %2 = arith.addf %1, %0 : vector<8x32xf32>
    %c0_3 = arith.constant 0 : index
    %c0_4 = arith.constant 0 : index
    %3 = vector.load %arg3[%c0_3, %c0_4] : memref<8x64xf32, #tpu.memory_space<vmem>>, vector<8x32xf32>
    tpu.vector_store %arg3[%c0_3, %c0_4], %2 {strides = array<i32>} : memref<8x64xf32, #tpu.memory_space<vmem>>, vector<8x32xf32>,
    %c0_5 = arith.constant 0 : index
    %c32 = arith.constant 32 : index
    %4 = vector.load %arg1[%c0_5, %c32] : memref<8x64xf32, #tpu.memory_space<vmem>>, vector<8x32xf32>
    %5 = arith.addf %4, %0 : vector<8x32xf32>
    %c0_6 = arith.constant 0 : index
    %c32_7 = arith.constant 32 : index
    %6 = vector.load %arg3[%c0_6, %c32_7] : memref<8x64xf32, #tpu.memory_space<vmem>>, vector<8x32xf32>
    tpu.vector_store %arg3[%c0_6, %c32_7], %5 {strides = array<i32>} : memref<8x64xf32, #tpu.memory_space<vmem>>, vector<8x32xf32>,
    return
  }
  func.func @transform_0(%arg0: i32) -> (i32, i32) {
    %c0_i32 = arith.constant 0 : i32
    %c0_i32_0 = arith.constant 0 : i32
    return %arg0, %c0_i32 : i32, i32
  }
  func.func @transform_1(%arg0: i32) -> (i32, i32) {
    %c0_i32 = arith.constant 0 : i32
    %c0_i32_0 = arith.constant 0 : i32
    return %arg0, %c0_i32 : i32, i32
  }
  func.func @transform_2(%arg0: i32) -> (i32, i32) {
    %c0_i32 = arith.constant 0 : i32
    %c0_i32_0 = arith.constant 0 : i32
    return %arg0, %c0_i32 : i32, i32
  }
}

</mosaic_0001>

<llo_original>
// kernel: tpu_custom_call.1
$region0: #{tpu_custom_call.1}
  #allocation0 [shape = 'u32[]', space=smem, size = 0x4, offset = 0x4, fixed_abs, tag = 'smem constant byte address 0x4 - core index']
  #allocation1 [shape = 'u32[144,128]{1,0:T(1,128)}', space=vmem, size = 0x12000, scoped, tag = 'internal scratch']
  %s0 = inlined_call_operand.vmem [shape: f32[8,64], index: 0, kind: input, shape index: {}]
  %s1 = inlined_call_operand.vmem [shape: f32[64,32], index: 1, kind: input, shape index: {}]
  %s2 = inlined_call_operand.hbm [shape: f32[8,64], index: 2, kind: output, shape index: {}]
  %s3 = sld [smem:[#allocation0]]
  $region18: #{tpu_custom_call.1} parent=0
    _
  %s5 = ssub.s32 1, %s3
  %s6 = scalar_select 0, %s5, %s3
  $region1: #{tpu_custom_call.1} parent=0
    #allocation2 [shape = 'u8[4096]{0}', space=vmem, size = 0x1000, scoped, tag = 'output window, operand 0, single buffered']
    #allocation3 [shape = 's32[1]{0}', space=sflag, size = 0x4, scoped, tag = 'scoped memory for tpu_custom_call.1']
    %7 = vsyncpa [#allocation3], 0
    // Predicated region
    $region2: #{tpu_custom_call.1} parent=1 // pred_check
      _
    $region3: #{tpu_custom_call.1} parent=1 // pred_check_branch
      %9 = sbr.rel (0) target = $region5
    $region4: #{tpu_custom_call.1} parent=1 // pred_region
      _
    $region5: #{tpu_custom_call.1} parent=1 // pred_fallthru
      _
    // Predicated region
    $region6: #{tpu_custom_call.1} parent=1 // pred_check
      _
    $region7: #{tpu_custom_call.1} parent=1 // pred_check_branch
      %11 = sbr.rel (0) target = $region9
    $region8: #{tpu_custom_call.1} parent=1 // pred_region
      _
    $region9: #{tpu_custom_call.1} parent=1 // pred_fallthru
      _
    %v12 = vld [vmem:[%s1] sm:$0xff]
    %v13 = vld [vmem:[%s0] sm:$0xff]
    %v14 = vadd.f32 %v13, %v12
    %vm15 = vcmask 261120
    %16 = vst.msk [vmem:[#allocation2] sm:$0xff] %vm15, %v14
    %v17 = vld [vmem:[%s0] sm:$0xff]
    %19 = vrot.lane.b32.xlu0 %v12, 32
    %v20 = vpop.permute.xlu0 %19
    %v22 = vadd.f32 %v17, %v20
    %vm23 = vcmask 523520
    %24 = vst.msk [vmem:[#allocation2] sm:$0xff] %vm23, %v22
    // Predicated region
    $region10: #{tpu_custom_call.1} parent=1 // pred_check
      _
    $region11: #{tpu_custom_call.1} parent=1 // pred_check_branch
      %26 = sbr.rel (0) target = $region13
    $region12: #{tpu_custom_call.1} parent=1 // pred_region
      %s28 = ssub.s32 128, 128
      %29 = vsyncadd [#allocation3], %s28
      %s31 = sshll.u32 [#allocation2], 4
      %s32 = int_to_ptr.vmem [resolvable:$true] %s31
      %34 = dma.vmem_to_hbm [thread:$0]  %s32, 128, %s2, [#allocation3]
    $region13: #{tpu_custom_call.1} parent=1 // pred_fallthru
      _
    // Predicated region
    $region14: #{tpu_custom_call.1} parent=1 // pred_check
      _
    $region15: #{tpu_custom_call.1} parent=1 // pred_check_branch
      %36 = sbr.rel (0) target = $region17
    $region16: #{tpu_custom_call.1} parent=1 // pred_region
      %37 = dma.done [#allocation3], 128
    $region17: #{tpu_custom_call.1} parent=1 // pred_fallthru
      _
    %38 = vsyncpa [#allocation3], 1

</llo_original>
